<compile_context>
chip_gen: v5e
topology: v5e:2x2
jax: 0.10.0
libtpu: 0.0.40
codegen_flags: <defaults>
</compile_context>

<pallas_src>
import functools

import jax
import jax.numpy as jnp
from jax.experimental import pallas as pl
from jax.experimental.pallas import tpu as pltpu


# ----------------------------- kernel helpers ------------------------------ #

def _layernorm(x, gamma, beta, eps=1e-5):
    mu = jnp.mean(x, axis=-1, keepdims=True)
    var = jnp.mean((x - mu) ** 2, axis=-1, keepdims=True)
    return (x - mu) * jax.lax.rsqrt(var + eps) * gamma + beta


# -------------------- kernel 1: source-side projection --------------------- #

def source_proj_kernel(x_ref, kq_ref, vall_ref, exp_ref, ev_ref, eh_ref):
    """Target-independent projections, computed once per AllSet block.

    x    [N_src, C_in]   bf16 source features
    KQ   [C_in, heads]   bf16 folded Kw[h] @ Qw[h]^T
    Vall [C_in, hidden]  bf16 packed per-head value weights
    EXP  [heads, hidden] bf16 0/1 head -> column-group expand matrix
    out: ev [N_src, hidden] bf16 (exp-score-scaled values), eh [N_src, heads] bf16
    """
    x = x_ref[...]                                                        # [N_src, C_in]
    alpha = jnp.dot(x, kq_ref[...], preferred_element_type=jnp.float32)   # [N_src, H]
    alpha = alpha - jnp.max(alpha, axis=0, keepdims=True)                 # valid global shift
    e = jnp.exp(alpha)                                                    # [N_src, H] f32
    e_exp = jnp.dot(e.astype(jnp.bfloat16), exp_ref[...],
                    preferred_element_type=jnp.float32)                   # [N_src, hidden]
    xv = jnp.dot(x, vall_ref[...], preferred_element_type=jnp.float32)    # [N_src, hidden]
    ev_ref[...] = (e_exp * xv).astype(ev_ref.dtype)
    eh_ref[...] = e.astype(eh_ref.dtype)


# ------------------ kernel 2: masked-softmax aggregation ------------------- #

def allset_agg_kernel(*refs, fuse_head):
    """Per-target-tile aggregation + block epilogue (+ optional fused Linear head).

    refs (in order):
      mask [T, N_src] bf16 0/1 incidence tile (targets x sources), streamed
      ev   [N_src, hidden] bf16, eh [N_src, heads] bf16, EXP [heads, hidden] bf16
      Qall [1, hidden] f32 (query skip), LN0/LN1 gamma/beta f32,
      MLP W1/W2 bf16 + b1/b2 f32, [head W bf16, b f32], out.
    """
    if fuse_head:
        (mask_ref, ev_ref, eh_ref, exp_ref, qall_ref,
         g0_ref, b0_ref, g1_ref, b1_ref,
         w1_ref, bb1_ref, w2_ref, bb2_ref,
         lw_ref, lb_ref, out_ref) = refs
    else:
        (mask_ref, ev_ref, eh_ref, exp_ref, qall_ref,
         g0_ref, b0_ref, g1_ref, b1_ref,
         w1_ref, bb1_ref, w2_ref, bb2_ref, out_ref) = refs

    mask = mask_ref[...]                                                  # [T, N_src] bf16

    # numerator: one lane-dense MXU matmul over the full hidden width
    numer = jnp.dot(mask, ev_ref[...], preferred_element_type=jnp.float32)    # [T, hidden]
    # denominator: per-head reduction (heads << hidden), 0/1-expanded back to hidden lanes
    denom_h = jnp.dot(mask, eh_ref[...], preferred_element_type=jnp.float32)  # [T, heads]
    denom_h = jnp.where(denom_h > 0.0, denom_h, 1.0)    # targets w/o neighbors -> msg 0
    rinv_h = pl.reciprocal(denom_h, approx=True)                              # [T, heads]
    rinv = jnp.dot(rinv_h, exp_ref[...].astype(jnp.float32),
                   preferred_element_type=jnp.float32)                        # [T, hidden]
    msg = numer * rinv + qall_ref[...]                                        # query skip

    # epilogue: LN0 -> MLP -> residual ReLU -> LN1 -> layer ReLU  (f32 math)
    y = _layernorm(msg, g0_ref[...], b0_ref[...])
    h1 = jnp.maximum(
        jnp.dot(y.astype(jnp.bfloat16), w1_ref[...],
                preferred_element_type=jnp.float32) + bb1_ref[...], 0.0)
    h2 = jnp.dot(h1.astype(jnp.bfloat16), w2_ref[...],
                 preferred_element_type=jnp.float32) + bb2_ref[...]
    z = _layernorm(y + jnp.maximum(h2, 0.0), g1_ref[...], b1_ref[...])
    blk = jnp.maximum(z, 0.0)                                             # layer ReLU

    if fuse_head:
        out = jnp.dot(blk.astype(jnp.bfloat16), lw_ref[...],
                      preferred_element_type=jnp.float32) + lb_ref[...]
        out_ref[...] = out.astype(out_ref.dtype)
    else:
        out_ref[...] = blk.astype(out_ref.dtype)


def linear_kernel(x_ref, w_ref, b_ref, out_ref):
    """out = x @ W + b  (only used on the graph-pooled path)."""
    out_ref[...] = (jnp.dot(x_ref[...], w_ref[...],
                            preferred_element_type=jnp.float32) + b_ref[...])


# ----------------------------- wrappers ------------------------------------ #

def _resident(a):
    """Constant index_map: array stays in VMEM across all grid steps."""
    return pl.BlockSpec(a.shape, lambda i: (0,) * a.ndim)


def _target_tile(n_tgt):
    """Largest tile from an (8,128)-friendly ladder that divides n_tgt (else full)."""
    for t in (1024, 512, 256, 128, 64, 32, 16, 8):
        if n_tgt % t == 0:
            return t
    return n_tgt


def source_projection(x_src, p):
    n_src = x_src.shape[0]
    heads = p["KQ"].shape[1]
    hidden = p["Vall"].shape[1]
    args = (x_src, p["KQ"], p["Vall"], p["EXP"])
    return pl.pallas_call(
        source_proj_kernel,
        out_shape=(jax.ShapeDtypeStruct((n_src, hidden), jnp.bfloat16),
                   jax.ShapeDtypeStruct((n_src, heads), jnp.bfloat16)),
        grid_spec=pltpu.PrefetchScalarGridSpec(
            num_scalar_prefetch=0,
            grid=(1,),
            in_specs=[_resident(a) for a in args],
            out_specs=(pl.BlockSpec((n_src, hidden), lambda i: (0, 0)),
                       pl.BlockSpec((n_src, heads), lambda i: (0, 0))),
        ),
        compiler_params=pltpu.CompilerParams(
            dimension_semantics=("arbitrary",)),
    )(*args)


def allset_aggregate(mask, ev, eh, p, *, head=None):
    """Target-tiled aggregation + epilogue; targets streamed over a parallel grid axis."""
    n_tgt, n_src = mask.shape
    hidden = ev.shape[1]
    t_tgt = _target_tile(n_tgt)
    grid = (n_tgt // t_tgt,)

    if head is None:
        out_dim, out_dtype, fuse = hidden, jnp.bfloat16, False
        extra = ()
    else:
        out_dim, out_dtype, fuse = head["W"].shape[1], jnp.float32, True
        extra = (head["W"], head["b"])

    args = (mask, ev, eh, p["EXP"], p["Qall"],
            p["ln0_g"], p["ln0_b"], p["ln1_g"], p["ln1_b"],
            p["W1"], p["b1"], p["W2"], p["b2"]) + extra

    in_specs = [pl.BlockSpec((t_tgt, n_src), lambda i: (i, 0))]      # streamed mask tiles
    in_specs += [_resident(a) for a in args[1:]]                     # everything else resident

    return pl.pallas_call(
        functools.partial(allset_agg_kernel, fuse_head=fuse),
        out_shape=jax.ShapeDtypeStruct((n_tgt, out_dim), out_dtype),
        grid_spec=pltpu.PrefetchScalarGridSpec(
            num_scalar_prefetch=0,
            grid=grid,
            in_specs=in_specs,
            out_specs=pl.BlockSpec((t_tgt, out_dim), lambda i: (i, 0)),
        ),
        compiler_params=pltpu.CompilerParams(
            dimension_semantics=("parallel",),       # megacore-shard target tiles (v7x)
            vmem_limit_bytes=32 * 1024 * 1024,       # far from binding at these shapes
        ),
    )(*args)


def allset_layer(mask, x_src, p, *, head=None):
    ev, eh = source_projection(x_src, p)
    return allset_aggregate(mask, ev, eh, p, head=head)


def linear(x, w, b):
    return pl.pallas_call(
        linear_kernel,
        out_shape=jax.ShapeDtypeStruct((x.shape[0], w.shape[1]), jnp.float32),
        in_specs=[pl.BlockSpec(memory_space=pltpu.MemorySpace.VMEM)] * 3,
        out_specs=pl.BlockSpec(memory_space=pltpu.MemorySpace.VMEM),
    )(x, w, b)


def arxiv_hgnn_forward(x_0, incidence_1, params, *, out_pool=False):
    x_src = x_0.astype(jnp.bfloat16)
    inc = incidence_1.astype(jnp.bfloat16)      # halve mask DMA bytes
    inc_t = inc.T                               # transposed once, used by v2e only

    # vertex -> hyperedge  (targets = hyperedges), layer ReLU fused in kernel
    x_1 = allset_layer(inc_t, x_src, params["v2e"])

    if out_pool:                                 # task_level == 'graph'
        x_0n = allset_layer(inc, x_1, params["e2v"])
        x = jnp.max(x_0n.astype(jnp.float32), axis=0, keepdims=True)
        return linear(x.astype(jnp.bfloat16), params["head"]["W"], params["head"]["b"])

    # task_level == 'node': final Linear fused into the e2v aggregation epilogue
    return allset_layer(inc, x_1, params["e2v"], head=params["head"])


# ----------------------------- parameter init ------------------------------ #

def _xavier(key, shape, fan_in, fan_out):
    limit = (6.0 / (fan_in + fan_out)) ** 0.5
    return jax.random.uniform(key, shape, jnp.float32, -limit, limit)


def init_block_params(key, c_in, hidden, heads):
    """Torch-like per-head parameters (before folding)."""
    dh = hidden // heads
    ks = jax.random.split(key, 5)
    return dict(
        K=_xavier(ks[0], (heads, c_in, dh), c_in, dh),
        Q=_xavier(ks[1], (heads, 1, dh), 1, dh),
        V=_xavier(ks[2], (heads, c_in, dh), c_in, dh),
        ln0_g=jnp.ones((1, hidden), jnp.float32),
        ln0_b=jnp.zeros((1, hidden), jnp.float32),
        ln1_g=jnp.ones((1, hidden), jnp.float32),
        ln1_b=jnp.zeros((1, hidden), jnp.float32),
        W1=_xavier(ks[3], (hidden, hidden), hidden, hidden),
        b1=jnp.zeros((1, hidden), jnp.float32),
        W2=_xavier(ks[4], (hidden, hidden), hidden, hidden),
        b2=jnp.zeros((1, hidden), jnp.float32),
    )


def fold_block_params(p, heads):
    """Fold Q into K, pack heads into lane-dense 2-D weights, cast matmul weights to bf16."""
    K, Q, V = p["K"], p["Q"], p["V"]
    h, c_in, dh = K.shape
    hidden = h * dh
    kq = jnp.einsum("hcd,hd->ch", K, Q[:, 0, :])                      # [C_in, H]
    v_all = jnp.transpose(V, (1, 0, 2)).reshape(c_in, hidden)         # [C_in, hidden]
    q_all = Q.reshape(1, hidden)                                      # [1, hidden]
    expand = jnp.repeat(jnp.eye(heads, dtype=jnp.float32), dh, axis=1)  # [H, hidden] 0/1
    return dict(
        KQ=kq.astype(jnp.bfloat16),
        EXP=expand.astype(jnp.bfloat16),
        Vall=v_all.astype(jnp.bfloat16),
        Qall=q_all,                                   # added post-matmul -> keep f32
        ln0_g=p["ln0_g"], ln0_b=p["ln0_b"],
        ln1_g=p["ln1_g"], ln1_b=p["ln1_b"],
        W1=p["W1"].astype(jnp.bfloat16), b1=p["b1"],
        W2=p["W2"].astype(jnp.bfloat16), b2=p["b2"],
    )


def init_params(key, in_channels, hidden_channels, out_channels, heads):
    k_v2e, k_e2v, k_lin = jax.random.split(key, 3)
    return dict(
        v2e=fold_block_params(
            init_block_params(k_v2e, in_channels, hidden_channels, heads), heads),
        e2v=fold_block_params(
            init_block_params(k_e2v, hidden_channels, hidden_channels, heads), heads),
        head=dict(
            W=_xavier(k_lin, (hidden_channels, out_channels),
                      hidden_channels, out_channels).astype(jnp.bfloat16),
            b=jnp.zeros((1, out_channels), jnp.float32),
        ),
    )


# ----------------------------- main ---------------------------------------- #

if __name__ == "__main__":
    n_nodes, n_edges = 16, 8
    in_channels, hidden_channels, out_channels, heads = 16, 32, 8, 4

    key = jax.random.PRNGKey(0)
    k_x, k_inc, k_par = jax.random.split(key, 3)

    x_0 = jax.random.normal(k_x, (n_nodes, in_channels), jnp.float32)

    # dense 0/1 incidence matrix [n_nodes, n_edges]; every node in >=1 edge,
    # every edge contains >=1 node.
    incidence_1 = (jax.random.uniform(k_inc, (n_nodes, n_edges)) < 0.4
                   ).astype(jnp.float32)
    incidence_1 = incidence_1.at[jnp.arange(n_nodes),
                                 jnp.arange(n_nodes) % n_edges].set(1.0)

    params = init_params(k_par, in_channels, hidden_channels, out_channels, heads)

    out = arxiv_hgnn_forward(x_0, incidence_1, params, out_pool=False)
    out = jax.block_until_ready(out)

    assert out.shape == (n_nodes, out_channels), out.shape
    assert bool(jnp.all(jnp.isfinite(out)))
    print("KERNEL_OK")
</pallas_src>

<mosaic_0001>
module attributes {stable_mosaic.version = 11 : i64} {
  func.func @source_proj_kernel(%arg0: i32, %arg1: memref<16x16xbf16, #tpu.memory_space<vmem>>, %arg2: memref<16x4xbf16, #tpu.memory_space<vmem>>, %arg3: memref<16x32xbf16, #tpu.memory_space<vmem>>, %arg4: memref<4x32xbf16, #tpu.memory_space<vmem>>, %arg5: memref<16x32xbf16, #tpu.memory_space<vmem>>, %arg6: memref<16x4xbf16, #tpu.memory_space<vmem>>) attributes {dimension_semantics = [#tpu.dimension_semantics<arbitrary>], iteration_bounds = array<i64: 1>, scalar_prefetch = 0 : i64, scratch_operands = 0 : i64, tpu.core_type = #tpu.core_type<tc>, window_params = [{pipeline_mode = #tpu.pipeline_mode<synchronous>, transform_indices = @transform_0, window_bounds = array<i64: 16, 16>}, {pipeline_mode = #tpu.pipeline_mode<synchronous>, transform_indices = @transform_1, window_bounds = array<i64: 16, 4>}, {pipeline_mode = #tpu.pipeline_mode<synchronous>, transform_indices = @transform_2, window_bounds = array<i64: 16, 32>}, {pipeline_mode = #tpu.pipeline_mode<synchronous>, transform_indices = @transform_3, window_bounds = array<i64: 4, 32>}, {pipeline_mode = #tpu.pipeline_mode<synchronous>, transform_indices = @transform_4, window_bounds = array<i64: 16, 32>}, {pipeline_mode = #tpu.pipeline_mode<synchronous>, transform_indices = @transform_5, window_bounds = array<i64: 16, 4>}]} {
    %c0 = arith.constant 0 : index
    %c0_0 = arith.constant 0 : index
    %0 = vector.load %arg1[%c0, %c0_0] : memref<16x16xbf16, #tpu.memory_space<vmem>>, vector<16x16xbf16>
    %c0_1 = arith.constant 0 : index
    %c0_2 = arith.constant 0 : index
    %1 = vector.load %arg2[%c0_1, %c0_2] : memref<16x4xbf16, #tpu.memory_space<vmem>>, vector<16x4xbf16>
    %cst = arith.constant dense<0.000000e+00> : vector<16x4xf32>
    %2 = tpu.matmul %0, %1, %cst {dimension_numbers = #tpu.dot_dimension_numbers<[1], [0], [0], [1], [0, 0, 1, 1], [], []>} : vector<16x16xbf16>, vector<16x4xbf16>, vector<16x4xf32> -> vector<16x4xf32>
    %cst_3 = arith.constant dense<0xFF800000> : vector<4xf32>
    %3 = vector.multi_reduction <maximumf>, %2, %cst_3 [0] : vector<16x4xf32> to vector<4xf32>
    %4 = vector.shape_cast %3 : vector<4xf32> to vector<1x4xf32>
    %5 = vector.broadcast %4 : vector<1x4xf32> to vector<16x4xf32>
    %6 = arith.subf %2, %5 : vector<16x4xf32>
    %7 = math.exp %6 : vector<16x4xf32>
    %8 = arith.truncf %7 : vector<16x4xf32> to vector<16x4xbf16>
    %c0_4 = arith.constant 0 : index
    %c0_5 = arith.constant 0 : index
    %9 = vector.load %arg4[%c0_4, %c0_5] : memref<4x32xbf16, #tpu.memory_space<vmem>>, vector<4x32xbf16>
    %cst_6 = arith.constant dense<0.000000e+00> : vector<16x32xf32>
    %10 = tpu.matmul %8, %9, %cst_6 {dimension_numbers = #tpu.dot_dimension_numbers<[1], [0], [0], [1], [0, 0, 1, 1], [], []>} : vector<16x4xbf16>, vector<4x32xbf16>, vector<16x32xf32> -> vector<16x32xf32>
    %c0_7 = arith.constant 0 : index
    %c0_8 = arith.constant 0 : index
    %11 = vector.load %arg3[%c0_7, %c0_8] : memref<16x32xbf16, #tpu.memory_space<vmem>>, vector<16x32xbf16>
    %cst_9 = arith.constant dense<0.000000e+00> : vector<16x32xf32>
    %12 = tpu.matmul %0, %11, %cst_9 {dimension_numbers = #tpu.dot_dimension_numbers<[1], [0], [0], [1], [0, 0, 1, 1], [], []>} : vector<16x16xbf16>, vector<16x32xbf16>, vector<16x32xf32> -> vector<16x32xf32>
    %13 = arith.mulf %10, %12 : vector<16x32xf32>
    %14 = arith.truncf %13 : vector<16x32xf32> to vector<16x32xbf16>
    %c0_10 = arith.constant 0 : index
    %c0_11 = arith.constant 0 : index
    %15 = vector.load %arg5[%c0_10, %c0_11] : memref<16x32xbf16, #tpu.memory_space<vmem>>, vector<16x32xbf16>
    tpu.vector_store %arg5[%c0_10, %c0_11], %14 {strides = array<i32>} : memref<16x32xbf16, #tpu.memory_space<vmem>>, vector<16x32xbf16>,
    %16 = arith.truncf %7 : vector<16x4xf32> to vector<16x4xbf16>
    %c0_12 = arith.constant 0 : index
    %c0_13 = arith.constant 0 : index
    %17 = vector.load %arg6[%c0_12, %c0_13] : memref<16x4xbf16, #tpu.memory_space<vmem>>, vector<16x4xbf16>
    tpu.vector_store %arg6[%c0_12, %c0_13], %16 {strides = array<i32>} : memref<16x4xbf16, #tpu.memory_space<vmem>>, vector<16x4xbf16>,
    return
  }
  func.func @transform_0(%arg0: i32) -> (i32, i32) {
    %c0_i32 = arith.constant 0 : i32
    %c0_i32_0 = arith.constant 0 : i32
    %c0_i32_1 = arith.constant 0 : i32
    return %c0_i32, %c0_i32_0 : i32, i32
  }
  func.func @transform_1(%arg0: i32) -> (i32, i32) {
    %c0_i32 = arith.constant 0 : i32
    %c0_i32_0 = arith.constant 0 : i32
    %c0_i32_1 = arith.constant 0 : i32
    return %c0_i32, %c0_i32_0 : i32, i32
  }
  func.func @transform_2(%arg0: i32) -> (i32, i32) {
    %c0_i32 = arith.constant 0 : i32
    %c0_i32_0 = arith.constant 0 : i32
    %c0_i32_1 = arith.constant 0 : i32
    return %c0_i32, %c0_i32_0 : i32, i32
  }
  func.func @transform_3(%arg0: i32) -> (i32, i32) {
    %c0_i32 = arith.constant 0 : i32
    %c0_i32_0 = arith.constant 0 : i32
    %c0_i32_1 = arith.constant 0 : i32
    return %c0_i32, %c0_i32_0 : i32, i32
  }
  func.func @transform_4(%arg0: i32) -> (i32, i32) {
    %c0_i32 = arith.constant 0 : i32
    %c0_i32_0 = arith.constant 0 : i32
    %c0_i32_1 = arith.constant 0 : i32
    return %c0_i32, %c0_i32_0 : i32, i32
  }
  func.func @transform_5(%arg0: i32) -> (i32, i32) {
    %c0_i32 = arith.constant 0 : i32
    %c0_i32_0 = arith.constant 0 : i32
    %c0_i32_1 = arith.constant 0 : i32
    return %c0_i32, %c0_i32_0 : i32, i32
  }
}

</mosaic_0001>

<llo_original>
// kernel: tpu_custom_call.1
$region0: #{tpu_custom_call.1}
  #allocation0 [shape = 'u32[]', space=smem, size = 0x4, offset = 0x4, fixed_abs, tag = 'smem constant byte address 0x4 - core index']
  #allocation1 [shape = 'u32[72,128]{1,0:T(1,128)}', space=vmem, size = 0x9000, scoped, tag = 'internal scratch']
  %s0 = inlined_call_operand.vmem [shape: bf16[16,16], index: 0, kind: input, shape index: {}]
  %s1 = inlined_call_operand.vmem [shape: bf16[16,4], index: 1, kind: input, shape index: {}]
  %s2 = inlined_call_operand.hbm [shape: bf16[16,32], index: 2, kind: input, shape index: {}]
  %s3 = inlined_call_operand.vmem [shape: bf16[4,32], index: 3, kind: input, shape index: {}]
  %s4 = inlined_call_operand.hbm [shape: bf16[16,32], index: 4, kind: output, shape index: {0}]
  %s5 = inlined_call_operand.vmem [shape: bf16[16,4], index: 5, kind: output, shape index: {1}]
  %6 = xla_tuple %s4, %s5
  %s7 = sld [smem:[#allocation0]]
  $region38: #{tpu_custom_call.1} parent=0
    _
  %s9 = ssub.s32 1, %s7
  %s10 = scalar_select 0, %s9, %s7
  $region1: #{tpu_custom_call.1} parent=0
    #allocation2 [shape = 'u8[4096]{0}', space=vmem, size = 0x1000, scoped, tag = 'input window, operand 2, single buffered']
    #allocation3 [shape = 's32[1]{0}', space=sflag, size = 0x4, scoped, tag = 'scoped memory for tpu_custom_call.1']
    #allocation4 [shape = 's32[1]{0}', space=sflag, size = 0x4, scoped, tag = 'scoped memory for tpu_custom_call.1']
    #allocation5 [shape = 'u8[4096]{0}', space=vmem, size = 0x1000, scoped, tag = 'output window, operand 0, single buffered']
    %11 = vsyncpa [#allocation3], 0
    %12 = vsyncpa [#allocation4], 0
    // Predicated region
    $region2: #{tpu_custom_call.1} parent=1 // pred_check
      _
    $region3: #{tpu_custom_call.1} parent=1 // pred_check_branch
      %14 = sbr.rel (0) target = $region5
    $region4: #{tpu_custom_call.1} parent=1 // pred_region
      _
    $region5: #{tpu_custom_call.1} parent=1 // pred_fallthru
      _
    // Predicated region
    $region6: #{tpu_custom_call.1} parent=1 // pred_check
      _
    $region7: #{tpu_custom_call.1} parent=1 // pred_check_branch
      %16 = sbr.rel (0) target = $region9
    $region8: #{tpu_custom_call.1} parent=1 // pred_region
      _
    $region9: #{tpu_custom_call.1} parent=1 // pred_fallthru
      _
    // Predicated region
    $region10: #{tpu_custom_call.1} parent=1 // pred_check
      _
    $region11: #{tpu_custom_call.1} parent=1 // pred_check_branch
      %18 = sbr.rel (0) target = $region13
    $region12: #{tpu_custom_call.1} parent=1 // pred_region
      %20 = vsyncadd [#allocation3], 0
      %s21 = sshll.u32 %s2, 4
      %s22 = int_to_ptr.hbm [resolvable:$true] %s21
      %s23 = sshll.u32 [#allocation2], 4
      %s24 = int_to_ptr.vmem [resolvable:$true] %s23
      %29 = dma.hbm_to_vmem [thread:$0]  %s22, 128, %s24, [#allocation3], 64, 64, 4
    $region13: #{tpu_custom_call.1} parent=1 // pred_fallthru
      _
    // Predicated region
    $region14: #{tpu_custom_call.1} parent=1 // pred_check
      _
    $region15: #{tpu_custom_call.1} parent=1 // pred_check_branch
      %31 = sbr.rel (0) target = $region17
    $region16: #{tpu_custom_call.1} parent=1 // pred_region
      _
    $region17: #{tpu_custom_call.1} parent=1 // pred_fallthru
      _
    // Predicated region
    $region18: #{tpu_custom_call.1} parent=1 // pred_check
      _
    $region19: #{tpu_custom_call.1} parent=1 // pred_check_branch
      %33 = sbr.rel (0) target = $region21
    $region20: #{tpu_custom_call.1} parent=1 // pred_region
      %35 = dma.done [#allocation3], 128
    $region21: #{tpu_custom_call.1} parent=1 // pred_fallthru
      _
    %v37 = vld [vmem:[%s0] sm:$0xf]
    %v38 = vld [vmem:[%s0 + $0x4] sm:$0xf]
    %v39 = vld [vmem:[%s1] sm:$0xf]
    %v40 = vld [vmem:[%s1 + $0x4] sm:$0xf]
    %v43 = vunpack.c.l.b16 %v37
    %v44 = vunpack.c.l.b16 %v38
    %v45 = vpack.c.b16 %v44, %v43
    %v48 = vunpack.c.l.b16 %v39
    %v49 = vunpack.c.l.b16 %v40
    %v50 = vpack.c.b16 %v49, %v48
    %vm52 = vcmask 130048
    %v54 = vsel %vm52, %v45, 0
    %56 = vmatpush.bf16.msra.mxu0 0
    %57 = vmatpush.bf16.msra.mxu0 0
    %58 = vmatpush.bf16.msra.mxu0 0
    %59 = vmatpush.bf16.msra.mxu0 0
    %60 = vmatpush.bf16.msra.mxu0 0
    %61 = vmatpush.bf16.msra.mxu0 0
    %62 = vmatpush.bf16.msra.mxu0 0
    %63 = vmatpush.bf16.msra.mxu0 %v50
    %64 = vmatmul.bf16.gmra.mxu0 %v54
    %v65 = vpop.f32.mrf.mxu0
    %v66 = vadd.f32 0.0, %v65
    %v67 = vpop.f32.mrf.mxu0
    %v68 = vadd.f32 0.0, %v67
    %69 = vdwg.mxu0
    %vm70 = vcmask 31744
    %v71 = vsel %vm70, %v66, -inf
    %v72 = vsel %vm70, %v68, -inf
    %v73 = vmax.f32 %v71, %v72
    %v74 = vrot.slane %v73, 4
    %v75 = vmax.f32 %v73, %v74
    %v76 = vrot.slane %v75, 2
    %v77 = vmax.f32 %v75, %v76
    %v78 = vrot.slane %v77, 1
    %v79 = vmax.f32 %v77, %v78
    %v80 = vsub.f32 %v66, %v79
    %v81 = vsub.f32 %v68, %v79
    %v82 = vmul.f32 %v80, 1.442695
    %v83 = vpow.pop %v82
    %v84 = vmul.f32 %v81, 1.442695
    %v85 = vpow.pop %v84
    %v86 = vpack.c.bf16 %v83, %v83
    %v87 = vpack.c.bf16 %v85, %v85
    %v88 = vld [vmem:[%s3] sm:$0x3]
    %v91 = vunpack.c.l.b16 %v86
    %v92 = vunpack.c.l.b16 %v87
    %v93 = vpack.c.b16 %v92, %v91
    %v95 = vsel %vm70, %v93, 0
    %vm97 = vcmask 1041408
    %v99 = vsel %vm97, %v88, 0
    %101 = vmatpush.bf16.msra.mxu0 0
    %102 = vmatpush.bf16.msra.mxu0 0
    %103 = vmatpush.bf16.msra.mxu0 0
    %104 = vmatpush.bf16.msra.mxu0 0
    %105 = vmatpush.bf16.msra.mxu0 0
    %106 = vmatpush.bf16.msra.mxu0 0
    %107 = vmatpush.bf16.msra.mxu0 0
    %108 = vmatpush.bf16.msra.mxu0 %v99
    %109 = vmatmul.bf16.gmra.mxu0 %v95
    %v110 = vpop.f32.mrf.mxu0
    %v111 = vadd.f32 0.0, %v110
    %v112 = vpop.f32.mrf.mxu0
    %v113 = vadd.f32 0.0, %v112
    %114 = vdwg.mxu0
    %v115 = vld [vmem:[#allocation2] sm:$0xf]
    %v116 = vld [vmem:[#allocation2 + $0x4] sm:$0xf]
    %v119 = vunpack.c.l.b16 %v115
    %v120 = vunpack.c.l.b16 %v116
    %v121 = vpack.c.b16 %v120, %v119
    %123 = vmatpush.bf16.msra.mxu0 0
    %124 = vmatpush.bf16.msra.mxu0 0
    %125 = vmatpush.bf16.msra.mxu0 0
    %126 = vmatpush.bf16.msra.mxu0 0
    %127 = vmatpush.bf16.msra.mxu0 0
    %128 = vmatpush.bf16.msra.mxu0 0
    %129 = vmatpush.bf16.msra.mxu0 0
    %130 = vmatpush.bf16.msra.mxu0 %v121
    %131 = vmatmul.bf16.gmra.mxu0 %v54
    %v132 = vpop.f32.mrf.mxu0
    %v133 = vadd.f32 0.0, %v132
    %v134 = vpop.f32.mrf.mxu0
    %v135 = vadd.f32 0.0, %v134
    %136 = vdwg.mxu0
    %v137 = vmul.f32 %v111, %v133
    %v138 = vmul.f32 %v113, %v135
    %v139 = vpack.c.bf16 %v137, %v137
    %v140 = vpack.c.bf16 %v138, %v138
    %vm141 = vcmask 257024
    %142 = vst.msk [vmem:[#allocation5] sm:$0xf] %vm141, %v139
    %143 = vst.msk [vmem:[#allocation5 + $0x4] sm:$0xf] %vm141, %v140
    %vm144 = vcmask 27648
    %145 = vst.msk [vmem:[%s5] sm:$0xf] %vm144, %v86
    %146 = vst.msk [vmem:[%s5 + $0x4] sm:$0xf] %vm144, %v87
    // Predicated region
    $region22: #{tpu_custom_call.1} parent=1 // pred_check
      _
    $region23: #{tpu_custom_call.1} parent=1 // pred_check_branch
      %148 = sbr.rel (0) target = $region25
    $region24: #{tpu_custom_call.1} parent=1 // pred_region
      %150 = vsyncadd [#allocation4], 0
      %s151 = sshll.u32 [#allocation5], 4
      %s152 = int_to_ptr.vmem [resolvable:$true] %s151
      %s153 = sshll.u32 %s4, 4
      %s154 = int_to_ptr.hbm [resolvable:$true] %s153
      %159 = dma.vmem_to_hbm [thread:$0]  %s152, 128, %s154, [#allocation4], 64, 64, 4
    $region25: #{tpu_custom_call.1} parent=1 // pred_fallthru
      _
    // Predicated region
    $region26: #{tpu_custom_call.1} parent=1 // pred_check
      _
    $region27: #{tpu_custom_call.1} parent=1 // pred_check_branch
      %161 = sbr.rel (0) target = $region29
    $region28: #{tpu_custom_call.1} parent=1 // pred_region
      _
    $region29: #{tpu_custom_call.1} parent=1 // pred_fallthru
      _
    // Predicated region
    $region30: #{tpu_custom_call.1} parent=1 // pred_check
      _
    $region31: #{tpu_custom_call.1} parent=1 // pred_check_branch
      %163 = sbr.rel (0) target = $region33
    $region32: #{tpu_custom_call.1} parent=1 // pred_region
      %165 = dma.done [#allocation4], 128
    $region33: #{tpu_custom_call.1} parent=1 // pred_fallthru
      _
    // Predicated region
    $region34: #{tpu_custom_call.1} parent=1 // pred_check
      _
    $region35: #{tpu_custom_call.1} parent=1 // pred_check_branch
      %167 = sbr.rel (0) target = $region37
    $region36: #{tpu_custom_call.1} parent=1 // pred_region
      _
    $region37: #{tpu_custom_call.1} parent=1 // pred_fallthru
      _
    %168 = vsyncpa [#allocation3], 1
    %169 = vsyncpa [#allocation4], 1

</llo_original>
